<compile_context>
chip_gen: v7x
topology: tpu7x:2x2x1
jax: 0.10.0
libtpu: 0.0.40
codegen_flags: <defaults>
</compile_context>

<pallas_src>
import jax
import jax.numpy as jnp
from jax.experimental import pallas as pl
from jax.experimental.pallas import tpu as pltpu

LANES = 128
CHUNK_ROWS = 512                      # fold sub-chunk: (512,128) f32 temps = 256 KiB
TILE_BYTES = 4 * 1024 * 1024          # HBM bytes per input per grid step (dtype-invariant)
VMEM_LIMIT_BYTES = 32 * 1024 * 1024   # 2 inputs x 2 buffers x 4 MiB = 16 MiB + headroom
MIN_BLOCKS_FOR_SPLIT = 8              # only split across TensorCores if enough blocks


def _round_up(x: int, m: int) -> int:
    return ((x + m - 1) // m) * m


def _num_tensorcores() -> int:
    """Best-effort TensorCore count per chip (2 on v7x, else 1)."""
    try:
        kind = jax.devices()[0].device_kind.lower()
    except Exception:
        return 1
    return 2 if ("v7" in kind or "7x" in kind) else 1


def _make_dice_kernel(tile_rows: int, chunk_rows: int, steps_per_split: int,
                      valid_rows: int):
    n_chunks = tile_rows // chunk_rows
    gc = chunk_rows // 8  # sublane groups per chunk

    def dice_kernel(p_ref, t_ref, part_ref):
        c = pl.program_id(0)   # split (TensorCore) axis
        i = pl.program_id(1)   # sequential reduction axis

        # Reset this split's running sums at the start of its reduction loop.
        # The output block is resident across the reduction axis, so it is the
        # accumulator (no VMEM scratch, no final copy-out).
        @pl.when(i == 0)
        def _():
            part_ref[...] = jnp.zeros_like(part_ref)

        # Logical (unclamped) block id and the first row it covers.
        # Row-index math: rows = n/128 fits int32 for any realistic HBM size.
        blk = c * steps_per_split + i
        base_row = blk * tile_rows
        interior = (blk + 1) * tile_rows <= valid_rows

        def fold(k, masked):
            # Fold one (chunk_rows, 128) sub-chunk into the (8,128) vector
            # accumulators with plain VPU adds -- no cross-lane reduction in
            # the hot loop, and live f32 temporaries stay bounded.
            r0 = pl.multiple_of(k * chunk_rows, chunk_rows)
            p = p_ref[pl.ds(r0, chunk_rows), :].astype(jnp.float32)
            t = t_ref[pl.ds(r0, chunk_rows), :].astype(jnp.float32)
            if masked:
                row = (base_row + r0
                       + jax.lax.broadcasted_iota(jnp.int32, (chunk_rows, LANES), 0))
                keep = row < valid_rows
                # Select before multiply so stale/garbage rows cannot poison
                # the sums with NaN/Inf.
                p = jnp.where(keep, p, 0.0)
                t = jnp.where(keep, t, 0.0)
            part_ref[0, 0] += (p * t).reshape(gc, 8, LANES).sum(axis=0)
            part_ref[0, 1] += (p * p).reshape(gc, 8, LANES).sum(axis=0)
            part_ref[0, 2] += (t * t).reshape(gc, 8, LANES).sum(axis=0)

        # Fast path: tile lies entirely inside the valid rows (no masking).
        @pl.when(interior)
        def _():
            @pl.loop(0, n_chunks)
            def _(k):
                fold(k, masked=False)

        # Boundary tile or clamped duplicate tile: mask rows past the array.
        @pl.when(jnp.logical_not(interior))
        def _():
            @pl.loop(0, n_chunks)
            def _(k):
                fold(k, masked=True)

    return dice_kernel


def _make_input_index_map(steps_per_split: int, nblocks: int):
    def index_map(c, i):
        blk = c * steps_per_split + i
        # Clamp so a rounded-up split never DMAs past the array; the kernel's
        # row mask zeroes any duplicated block's contribution.
        return (jnp.minimum(blk, nblocks - 1), 0)
    return index_map


def dice_coefficient_loss(prediction: jax.Array, target: jax.Array,
                          eps: float = 1e-6) -> jax.Array:
    """Pallas TPU implementation of DiceCoefficientLoss.forward."""
    assert prediction.shape == target.shape

    p_flat = prediction.reshape(-1)
    t_flat = target.reshape(-1)
    n = p_flat.shape[0]

    itemsize = max(jnp.dtype(prediction.dtype).itemsize,
                   jnp.dtype(target.dtype).itemsize)

    # Lane alignment. For the common 128-aligned case this is a no-op (zero
    # copies). Tiny inputs are additionally rounded to a whole sublane group
    # (multiple of 8 rows) so the single full-dim block folds cleanly.
    # TODO(synk): a fully pad-free ragged path needs manual DMA (pl.ANY) or a
    # 1-D block layout; for 128-aligned numel the pad below never triggers.
    n128 = _round_up(n, LANES)
    n_pad = _round_up(n, 8 * LANES) if (n128 // LANES) < CHUNK_ROWS else n128
    if n_pad != n:
        p_flat = jnp.pad(p_flat, (0, n_pad - n))
        t_flat = jnp.pad(t_flat, (0, n_pad - n))

    rows = n_pad // LANES
    p2d = p_flat.reshape(rows, LANES)
    t2d = t_flat.reshape(rows, LANES)

    # Tile sizing: keep HBM bytes per grid step constant across dtypes.
    tile_rows_max = TILE_BYTES // (LANES * itemsize)
    if rows >= CHUNK_ROWS:
        tile_rows = min(tile_rows_max, (rows // CHUNK_ROWS) * CHUNK_ROWS)
        chunk_rows = CHUNK_ROWS
    else:
        tile_rows = rows          # full-dim block (rows is a multiple of 8 here)
        chunk_rows = rows

    nblocks = pl.cdiv(rows, tile_rows)

    # 2-way split only on 2-TensorCore chips (v7x) and only when there are
    # enough blocks that the possible clamped duplicate tile is negligible.
    num_splits = 2 if (_num_tensorcores() >= 2 and nblocks >= MIN_BLOCKS_FOR_SPLIT) else 1
    steps = pl.cdiv(nblocks, num_splits)

    in_map = _make_input_index_map(steps, nblocks)
    in_spec = pl.BlockSpec((tile_rows, LANES), in_map)

    if num_splits >= 2:
        # CORE_PARALLEL guarantees the split axis is sharded across the two
        # TensorCores; plain "parallel" does not change codegen.
        dim_sem = (pltpu.CORE_PARALLEL, pltpu.ARBITRARY)
    else:
        dim_sem = (pltpu.ARBITRARY, pltpu.ARBITRARY)

    partials = pl.pallas_call(
        _make_dice_kernel(tile_rows, chunk_rows, steps, rows),
        out_shape=jax.ShapeDtypeStruct((num_splits, 3, 8, LANES), jnp.float32),
        grid_spec=pltpu.PrefetchScalarGridSpec(
            num_scalar_prefetch=0,
            grid=(num_splits, steps),
            in_specs=[in_spec, in_spec],
            out_specs=pl.BlockSpec((1, 3, 8, LANES), lambda c, i: (c, 0, 0, 0)),
        ),
        compiler_params=pltpu.CompilerParams(
            dimension_semantics=dim_sem,
            vmem_limit_bytes=VMEM_LIMIT_BYTES,
        ),
    )(p2d, t2d)

    # Tiny final combine: (num_splits, 3, 8, 128) -> 3 scalars -> loss.
    sums = jnp.sum(partials, axis=(0, 2, 3))
    intersection = sums[0]
    denominator = jnp.maximum(sums[1] + sums[2], jnp.float32(eps))
    return 1.0 - 2.0 * intersection / denominator


def dice_coefficient_loss_ref(prediction, target, eps=1e-6):
    """Pure-JAX reference mirroring the PyTorch forward."""
    p = prediction.astype(jnp.float32)
    t = target.astype(jnp.float32)
    inter = jnp.sum(p * t)
    denom = jnp.sum(p * p) + jnp.sum(t * t)
    return 1.0 - 2.0 * inter / jnp.maximum(denom, eps)


if __name__ == "__main__":
    key = jax.random.PRNGKey(0)
    kp, kt = jax.random.split(key)

    # Segmentation-style NCHW inputs (128-aligned numel -> zero-copy path).
    shape = (2, 4, 16, 16)
    prediction = jax.nn.sigmoid(jax.random.normal(kp, shape, dtype=jnp.float32))
    target = (jax.random.uniform(kt, shape) > 0.5).astype(jnp.float32)
    loss = jax.block_until_ready(dice_coefficient_loss(prediction, target))
    ref = dice_coefficient_loss_ref(prediction, target)
    assert jnp.allclose(loss, ref, rtol=1e-5, atol=1e-6), (loss, ref)

    # Ragged numel: exercises the lane pad + single full-dim block path.
    shape2 = (2, 3, 33, 21)
    p2 = jax.nn.sigmoid(jax.random.normal(kp, shape2, dtype=jnp.float32))
    t2 = (jax.random.uniform(kt, shape2) > 0.5).astype(jnp.float32)
    loss2 = jax.block_until_ready(dice_coefficient_loss(p2, t2))
    ref2 = dice_coefficient_loss_ref(p2, t2)
    assert jnp.allclose(loss2, ref2, rtol=1e-5, atol=1e-6), (loss2, ref2)

    # Multi-block aligned case: exercises the grid reduction loop, the chunked
    # fold, and the masked boundary tile (4160 rows -> 4096-row tile, 2 blocks).
    shape3 = (4, 8, 128, 130)
    p3 = jax.nn.sigmoid(jax.random.normal(kp, shape3, dtype=jnp.float32))
    t3 = (jax.random.uniform(kt, shape3) > 0.5).astype(jnp.float32)
    loss3 = jax.block_until_ready(dice_coefficient_loss(p3, t3))
    ref3 = dice_coefficient_loss_ref(p3, t3)
    assert jnp.allclose(loss3, ref3, rtol=1e-4, atol=1e-5), (loss3, ref3)

    print("KERNEL_OK")
</pallas_src>

<mosaic_0001>
module attributes {stable_mosaic.version = 11 : i64} {
  func.func @dice_kernel(%arg0: i32, %arg1: i32, %arg2: memref<16x128xf32, #tpu.memory_space<vmem>>, %arg3: memref<16x128xf32, #tpu.memory_space<vmem>>, %arg4: memref<1x3x8x128xf32, #tpu.memory_space<vmem>>) attributes {dimension_semantics = [#tpu.dimension_semantics<arbitrary>, #tpu.dimension_semantics<arbitrary>], iteration_bounds = array<i64: 1, 1>, scalar_prefetch = 0 : i64, scratch_operands = 0 : i64, tpu.core_type = #tpu.core_type<tc>, window_params = [{transform_indices = @transform_0, window_bounds = array<i64: 16, 128>}, {transform_indices = @transform_1, window_bounds = array<i64: 16, 128>}, {transform_indices = @transform_2, window_bounds = array<i64: 1, 3, 8, 128>}]} {
    %c0_i32 = arith.constant 0 : i32
    %0 = arith.cmpi eq, %arg1, %c0_i32 : i32
    %1 = arith.extui %0 : i1 to i32
    %c0_i32_0 = arith.constant 0 : i32
    %2 = arith.cmpi ne, %1, %c0_i32_0 : i32
    scf.if %2 {
      %cst = arith.constant 0.000000e+00 : f32
      %14 = vector.broadcast %cst : f32 to vector<1x3x8x128xf32>
      %c0 = arith.constant 0 : index
      %c0_6 = arith.constant 0 : index
      %c0_7 = arith.constant 0 : index
      %c0_8 = arith.constant 0 : index
      %15 = vector.load %arg4[%c0, %c0_6, %c0_7, %c0_8] : memref<1x3x8x128xf32, #tpu.memory_space<vmem>>, vector<1x3x8x128xf32>
      tpu.vector_store %arg4[%c0, %c0_6, %c0_7, %c0_8], %14 {strides = array<i32>} : memref<1x3x8x128xf32, #tpu.memory_space<vmem>>, vector<1x3x8x128xf32>,
    } else {
    }
    %c1_i32 = arith.constant 1 : i32
    %3 = arith.muli %arg0, %c1_i32 : i32
    %4 = arith.addi %3, %arg1 : i32
    %c16_i32 = arith.constant 16 : i32
    %5 = arith.muli %4, %c16_i32 : i32
    %c1_i32_1 = arith.constant 1 : i32
    %6 = arith.addi %4, %c1_i32_1 : i32
    %c16_i32_2 = arith.constant 16 : i32
    %7 = arith.muli %6, %c16_i32_2 : i32
    %c16_i32_3 = arith.constant 16 : i32
    %8 = arith.cmpi sle, %7, %c16_i32_3 : i32
    %9 = arith.extui %8 : i1 to i32
    %c0_i32_4 = arith.constant 0 : i32
    %10 = arith.cmpi ne, %9, %c0_i32_4 : i32
    scf.if %10 {
      %c0_i32_6 = arith.constant 0 : i32
      %c1_i32_7 = arith.constant 1 : i32
      %14 = arith.muli %c0_i32_6, %c1_i32_7 : i32
      %c0_i32_8 = arith.constant 0 : i32
      %15 = arith.addi %c0_i32_8, %14 : i32
      %c16_i32_9 = arith.constant 16 : i32
      %16 = arith.muli %15, %c16_i32_9 : i32
      %17 = tpu.assume_multiple %16, 16 : i32
      %18 = arith.index_cast %17 : i32 to index
      %c0 = arith.constant 0 : index
      %19 = vector.load %arg2[%18, %c0] : memref<16x128xf32, #tpu.memory_space<vmem>>, vector<16x128xf32>
      %20 = arith.index_cast %17 : i32 to index
      %c0_10 = arith.constant 0 : index
      %21 = vector.load %arg3[%20, %c0_10] : memref<16x128xf32, #tpu.memory_space<vmem>>, vector<16x128xf32>
      %c0_11 = arith.constant 0 : index
      %c0_12 = arith.constant 0 : index
      %c0_13 = arith.constant 0 : index
      %c0_14 = arith.constant 0 : index
      %22 = vector.load %arg4[%c0_11, %c0_12, %c0_13, %c0_14] : memref<1x3x8x128xf32, #tpu.memory_space<vmem>>, vector<1x1x8x128xf32>
      %23 = vector.shape_cast %22 : vector<1x1x8x128xf32> to vector<8x128xf32>
      %24 = arith.mulf %19, %21 : vector<16x128xf32>
      %25 = vector.shape_cast %24 : vector<16x128xf32> to vector<2x8x128xf32>
      %cst = arith.constant dense<0.000000e+00> : vector<8x128xf32>
      %26 = vector.multi_reduction <add>, %25, %cst [0] : vector<2x8x128xf32> to vector<8x128xf32>
      %27 = arith.addf %23, %26 : vector<8x128xf32>
      %c0_15 = arith.constant 0 : index
      %c0_16 = arith.constant 0 : index
      %c0_17 = arith.constant 0 : index
      %c0_18 = arith.constant 0 : index
      %28 = vector.load %arg4[%c0_15, %c0_16, %c0_17, %c0_18] : memref<1x3x8x128xf32, #tpu.memory_space<vmem>>, vector<1x1x8x128xf32>
      %29 = vector.shape_cast %28 : vector<1x1x8x128xf32> to vector<8x128xf32>
      %30 = vector.shape_cast %27 : vector<8x128xf32> to vector<1x1x8x128xf32>
      tpu.vector_store %arg4[%c0_15, %c0_16, %c0_17, %c0_18], %30 {strides = array<i32>} : memref<1x3x8x128xf32, #tpu.memory_space<vmem>>, vector<1x1x8x128xf32>,
      %c0_19 = arith.constant 0 : index
      %c1 = arith.constant 1 : index
      %c0_20 = arith.constant 0 : index
      %c0_21 = arith.constant 0 : index
      %31 = vector.load %arg4[%c0_19, %c1, %c0_20, %c0_21] : memref<1x3x8x128xf32, #tpu.memory_space<vmem>>, vector<1x1x8x128xf32>
      %32 = vector.shape_cast %31 : vector<1x1x8x128xf32> to vector<8x128xf32>
      %33 = arith.mulf %19, %19 : vector<16x128xf32>
      %34 = vector.shape_cast %33 : vector<16x128xf32> to vector<2x8x128xf32>
      %cst_22 = arith.constant dense<0.000000e+00> : vector<8x128xf32>
      %35 = vector.multi_reduction <add>, %34, %cst_22 [0] : vector<2x8x128xf32> to vector<8x128xf32>
      %36 = arith.addf %32, %35 : vector<8x128xf32>
      %c0_23 = arith.constant 0 : index
      %c1_24 = arith.constant 1 : index
      %c0_25 = arith.constant 0 : index
      %c0_26 = arith.constant 0 : index
      %37 = vector.load %arg4[%c0_23, %c1_24, %c0_25, %c0_26] : memref<1x3x8x128xf32, #tpu.memory_space<vmem>>, vector<1x1x8x128xf32>
      %38 = vector.shape_cast %37 : vector<1x1x8x128xf32> to vector<8x128xf32>
      %39 = vector.shape_cast %36 : vector<8x128xf32> to vector<1x1x8x128xf32>
      tpu.vector_store %arg4[%c0_23, %c1_24, %c0_25, %c0_26], %39 {strides = array<i32>} : memref<1x3x8x128xf32, #tpu.memory_space<vmem>>, vector<1x1x8x128xf32>,
      %c0_27 = arith.constant 0 : index
      %c2 = arith.constant 2 : index
      %c0_28 = arith.constant 0 : index
      %c0_29 = arith.constant 0 : index
      %40 = vector.load %arg4[%c0_27, %c2, %c0_28, %c0_29] : memref<1x3x8x128xf32, #tpu.memory_space<vmem>>, vector<1x1x8x128xf32>
      %41 = vector.shape_cast %40 : vector<1x1x8x128xf32> to vector<8x128xf32>
      %42 = arith.mulf %21, %21 : vector<16x128xf32>
      %43 = vector.shape_cast %42 : vector<16x128xf32> to vector<2x8x128xf32>
      %cst_30 = arith.constant dense<0.000000e+00> : vector<8x128xf32>
      %44 = vector.multi_reduction <add>, %43, %cst_30 [0] : vector<2x8x128xf32> to vector<8x128xf32>
      %45 = arith.addf %41, %44 : vector<8x128xf32>
      %c0_31 = arith.constant 0 : index
      %c2_32 = arith.constant 2 : index
      %c0_33 = arith.constant 0 : index
      %c0_34 = arith.constant 0 : index
      %46 = vector.load %arg4[%c0_31, %c2_32, %c0_33, %c0_34] : memref<1x3x8x128xf32, #tpu.memory_space<vmem>>, vector<1x1x8x128xf32>
      %47 = vector.shape_cast %46 : vector<1x1x8x128xf32> to vector<8x128xf32>
      %48 = vector.shape_cast %45 : vector<8x128xf32> to vector<1x1x8x128xf32>
      tpu.vector_store %arg4[%c0_31, %c2_32, %c0_33, %c0_34], %48 {strides = array<i32>} : memref<1x3x8x128xf32, #tpu.memory_space<vmem>>, vector<1x1x8x128xf32>,
      %c1_i32_35 = arith.constant 1 : i32
    } else {
    }
    %true = arith.constant true
    %11 = arith.xori %8, %true : i1
    %12 = arith.extui %11 : i1 to i32
    %c0_i32_5 = arith.constant 0 : i32
    %13 = arith.cmpi ne, %12, %c0_i32_5 : i32
    scf.if %13 {
      %c0_i32_6 = arith.constant 0 : i32
      %c1_i32_7 = arith.constant 1 : i32
      %14 = arith.muli %c0_i32_6, %c1_i32_7 : i32
      %c0_i32_8 = arith.constant 0 : i32
      %15 = arith.addi %c0_i32_8, %14 : i32
      %c16_i32_9 = arith.constant 16 : i32
      %16 = arith.muli %15, %c16_i32_9 : i32
      %17 = tpu.assume_multiple %16, 16 : i32
      %18 = arith.index_cast %17 : i32 to index
      %c0 = arith.constant 0 : index
      %19 = vector.load %arg2[%18, %c0] : memref<16x128xf32, #tpu.memory_space<vmem>>, vector<16x128xf32>
      %20 = arith.index_cast %17 : i32 to index
      %c0_10 = arith.constant 0 : index
      %21 = vector.load %arg3[%20, %c0_10] : memref<16x128xf32, #tpu.memory_space<vmem>>, vector<16x128xf32>
      %22 = arith.addi %5, %17 : i32
      %23 = tpu.iota {dimensions = array<i32: 0>} : vector<16x128xi32>
      %24 = vector.broadcast %22 : i32 to vector<16x128xi32>
      %25 = arith.addi %24, %23 : vector<16x128xi32>
      %c16_i32_11 = arith.constant 16 : i32
      %26 = vector.broadcast %c16_i32_11 : i32 to vector<16x128xi32>
      %27 = arith.cmpi slt, %25, %26 : vector<16x128xi32>
      %cst = arith.constant 0.000000e+00 : f32
      %28 = vector.broadcast %cst : f32 to vector<16x128xf32>
      %29 = arith.select %27, %19, %28 : vector<16x128xi1>, vector<16x128xf32>
      %cst_12 = arith.constant 0.000000e+00 : f32
      %30 = vector.broadcast %cst_12 : f32 to vector<16x128xf32>
      %31 = arith.select %27, %21, %30 : vector<16x128xi1>, vector<16x128xf32>
      %c0_13 = arith.constant 0 : index
      %c0_14 = arith.constant 0 : index
      %c0_15 = arith.constant 0 : index
      %c0_16 = arith.constant 0 : index
      %32 = vector.load %arg4[%c0_13, %c0_14, %c0_15, %c0_16] : memref<1x3x8x128xf32, #tpu.memory_space<vmem>>, vector<1x1x8x128xf32>
      %33 = vector.shape_cast %32 : vector<1x1x8x128xf32> to vector<8x128xf32>
      %34 = arith.mulf %29, %31 : vector<16x128xf32>
      %35 = vector.shape_cast %34 : vector<16x128xf32> to vector<2x8x128xf32>
      %cst_17 = arith.constant dense<0.000000e+00> : vector<8x128xf32>
      %36 = vector.multi_reduction <add>, %35, %cst_17 [0] : vector<2x8x128xf32> to vector<8x128xf32>
      %37 = arith.addf %33, %36 : vector<8x128xf32>
      %c0_18 = arith.constant 0 : index
      %c0_19 = arith.constant 0 : index
      %c0_20 = arith.constant 0 : index
      %c0_21 = arith.constant 0 : index
      %38 = vector.load %arg4[%c0_18, %c0_19, %c0_20, %c0_21] : memref<1x3x8x128xf32, #tpu.memory_space<vmem>>, vector<1x1x8x128xf32>
      %39 = vector.shape_cast %38 : vector<1x1x8x128xf32> to vector<8x128xf32>
      %40 = vector.shape_cast %37 : vector<8x128xf32> to vector<1x1x8x128xf32>
      tpu.vector_store %arg4[%c0_18, %c0_19, %c0_20, %c0_21], %40 {strides = array<i32>} : memref<1x3x8x128xf32, #tpu.memory_space<vmem>>, vector<1x1x8x128xf32>,
      %c0_22 = arith.constant 0 : index
      %c1 = arith.constant 1 : index
      %c0_23 = arith.constant 0 : index
      %c0_24 = arith.constant 0 : index
      %41 = vector.load %arg4[%c0_22, %c1, %c0_23, %c0_24] : memref<1x3x8x128xf32, #tpu.memory_space<vmem>>, vector<1x1x8x128xf32>
      %42 = vector.shape_cast %41 : vector<1x1x8x128xf32> to vector<8x128xf32>
      %43 = arith.mulf %29, %29 : vector<16x128xf32>
      %44 = vector.shape_cast %43 : vector<16x128xf32> to vector<2x8x128xf32>
      %cst_25 = arith.constant dense<0.000000e+00> : vector<8x128xf32>
      %45 = vector.multi_reduction <add>, %44, %cst_25 [0] : vector<2x8x128xf32> to vector<8x128xf32>
      %46 = arith.addf %42, %45 : vector<8x128xf32>
      %c0_26 = arith.constant 0 : index
      %c1_27 = arith.constant 1 : index
      %c0_28 = arith.constant 0 : index
      %c0_29 = arith.constant 0 : index
      %47 = vector.load %arg4[%c0_26, %c1_27, %c0_28, %c0_29] : memref<1x3x8x128xf32, #tpu.memory_space<vmem>>, vector<1x1x8x128xf32>
      %48 = vector.shape_cast %47 : vector<1x1x8x128xf32> to vector<8x128xf32>
      %49 = vector.shape_cast %46 : vector<8x128xf32> to vector<1x1x8x128xf32>
      tpu.vector_store %arg4[%c0_26, %c1_27, %c0_28, %c0_29], %49 {strides = array<i32>} : memref<1x3x8x128xf32, #tpu.memory_space<vmem>>, vector<1x1x8x128xf32>,
      %c0_30 = arith.constant 0 : index
      %c2 = arith.constant 2 : index
      %c0_31 = arith.constant 0 : index
      %c0_32 = arith.constant 0 : index
      %50 = vector.load %arg4[%c0_30, %c2, %c0_31, %c0_32] : memref<1x3x8x128xf32, #tpu.memory_space<vmem>>, vector<1x1x8x128xf32>
      %51 = vector.shape_cast %50 : vector<1x1x8x128xf32> to vector<8x128xf32>
      %52 = arith.mulf %31, %31 : vector<16x128xf32>
      %53 = vector.shape_cast %52 : vector<16x128xf32> to vector<2x8x128xf32>
      %cst_33 = arith.constant dense<0.000000e+00> : vector<8x128xf32>
      %54 = vector.multi_reduction <add>, %53, %cst_33 [0] : vector<2x8x128xf32> to vector<8x128xf32>
      %55 = arith.addf %51, %54 : vector<8x128xf32>
      %c0_34 = arith.constant 0 : index
      %c2_35 = arith.constant 2 : index
      %c0_36 = arith.constant 0 : index
      %c0_37 = arith.constant 0 : index
      %56 = vector.load %arg4[%c0_34, %c2_35, %c0_36, %c0_37] : memref<1x3x8x128xf32, #tpu.memory_space<vmem>>, vector<1x1x8x128xf32>
      %57 = vector.shape_cast %56 : vector<1x1x8x128xf32> to vector<8x128xf32>
      %58 = vector.shape_cast %55 : vector<8x128xf32> to vector<1x1x8x128xf32>
      tpu.vector_store %arg4[%c0_34, %c2_35, %c0_36, %c0_37], %58 {strides = array<i32>} : memref<1x3x8x128xf32, #tpu.memory_space<vmem>>, vector<1x1x8x128xf32>,
      %c1_i32_38 = arith.constant 1 : i32
    } else {
    }
    return
  }
  func.func @transform_0(%arg0: i32, %arg1: i32) -> (i32, i32) {
    %c1_i32 = arith.constant 1 : i32
    %0 = arith.muli %arg0, %c1_i32 : i32
    %1 = arith.addi %0, %arg1 : i32
    %c0_i32 = arith.constant 0 : i32
    %2 = arith.minsi %1, %c0_i32 : i32
    %c0_i32_0 = arith.constant 0 : i32
    %c0_i32_1 = arith.constant 0 : i32
    return %2, %c0_i32_0 : i32, i32
  }
  func.func @transform_1(%arg0: i32, %arg1: i32) -> (i32, i32) {
    %c1_i32 = arith.constant 1 : i32
    %0 = arith.muli %arg0, %c1_i32 : i32
    %1 = arith.addi %0, %arg1 : i32
    %c0_i32 = arith.constant 0 : i32
    %2 = arith.minsi %1, %c0_i32 : i32
    %c0_i32_0 = arith.constant 0 : i32
    %c0_i32_1 = arith.constant 0 : i32
    return %2, %c0_i32_0 : i32, i32
  }
  func.func @transform_2(%arg0: i32, %arg1: i32) -> (i32, i32, i32, i32) {
    %c0_i32 = arith.constant 0 : i32
    %c0_i32_0 = arith.constant 0 : i32
    %c0_i32_1 = arith.constant 0 : i32
    %c0_i32_2 = arith.constant 0 : i32
    return %arg0, %c0_i32, %c0_i32_0, %c0_i32_1 : i32, i32, i32, i32
  }
}

</mosaic_0001>

<llo_original>
// kernel: tpu_custom_call.1
$region0: #{tpu_custom_call.1}
  #allocation0 [shape = 'u32[]', space=smem, size = 0x4, offset = 0x4, fixed_abs, tag = 'smem constant byte address 0x4 - core index']
  #allocation1 [shape = 'u32[144,128]{1,0:T(1,128)}', space=vmem, size = 0x12000, scoped, tag = 'internal scratch']
  %s0 = inlined_call_operand.hbm [shape: f32[16,128], index: 0, kind: input, shape index: {}]
  %s1 = inlined_call_operand.hbm [shape: f32[16,128], index: 1, kind: input, shape index: {}]
  %s2 = inlined_call_operand.hbm [shape: f32[1,3,8,128], index: 2, kind: output, shape index: {}]
  %s3 = sld [smem:[#allocation0]]
  $region38: #{tpu_custom_call.1} parent=0
    _
  %s5 = ssub.s32 1, %s3
  %s6 = scalar_select 0, %s5, %s3
  $region1: #{tpu_custom_call.1} parent=0
    #allocation2 [shape = 'u8[8192]{0}', space=vmem, size = 0x2000, scoped, tag = 'input window, operand 0, single buffered']
    #allocation3 [shape = 's32[1]{0}', space=sflag, size = 0x4, scoped, tag = 'scoped memory for tpu_custom_call.1']
    #allocation4 [shape = 's32[1]{0}', space=sflag, size = 0x4, scoped, tag = 'scoped memory for tpu_custom_call.1']
    #allocation5 [shape = 'u8[8192]{0}', space=vmem, size = 0x2000, scoped, tag = 'input window, operand 1, single buffered']
    #allocation6 [shape = 's32[1]{0}', space=sflag, size = 0x4, scoped, tag = 'scoped memory for tpu_custom_call.1']
    #allocation7 [shape = 'u8[12288]{0}', space=vmem, size = 0x3000, scoped, tag = 'output window, operand 0, single buffered']
    %7 = vsyncpa [#allocation3], 0
    %8 = vsyncpa [#allocation6], 0
    %9 = vsyncpa [#allocation4], 0
    // Predicated region
    $region2: #{tpu_custom_call.1} parent=1 // pred_check
      _
    $region3: #{tpu_custom_call.1} parent=1 // pred_check_branch
      %11 = sbr.rel (0) target = $region5
    $region4: #{tpu_custom_call.1} parent=1 // pred_region
      %s12 = sadd.s32 0, 0
      %p13 = scmp.lt.s32.totalorder %s12, 0
      %s14 = scalar_select %p13, %s12, 0
      %s15 = smul.u32 2, %s14
      %s17 = ssub.s32 256, 256
      %18 = vsyncadd [#allocation3], %s17
      %s19 = smul.addr %s15, 128
      %s20 = scalar_lea.hbm %s0, %s19
      %s21 = sshll.u32 [#allocation2], 4
      %s22 = int_to_ptr.vmem [resolvable:$true] %s21
      %27 = dma.hbm_to_vmem [thread:$0]  %s20, 256, %s22, [#allocation3], 128, 128, 8
    $region5: #{tpu_custom_call.1} parent=1 // pred_fallthru
      _
    // Predicated region
    $region6: #{tpu_custom_call.1} parent=1 // pred_check
      _
    $region7: #{tpu_custom_call.1} parent=1 // pred_check_branch
      %29 = sbr.rel (0) target = $region9
    $region8: #{tpu_custom_call.1} parent=1 // pred_region
      %s30 = sadd.s32 0, 0
      %p31 = scmp.lt.s32.totalorder %s30, 0
      %s32 = scalar_select %p31, %s30, 0
      %s33 = smul.u32 2, %s32
      %s35 = ssub.s32 256, 256
      %36 = vsyncadd [#allocation6], %s35
      %s37 = smul.addr %s33, 128
      %s38 = scalar_lea.hbm %s1, %s37
      %s39 = sshll.u32 [#allocation5], 4
      %s40 = int_to_ptr.vmem [resolvable:$true] %s39
      %45 = dma.hbm_to_vmem [thread:$0]  %s38, 256, %s40, [#allocation6], 128, 128, 8
    $region9: #{tpu_custom_call.1} parent=1 // pred_fallthru
      _
    // Predicated region
    $region10: #{tpu_custom_call.1} parent=1 // pred_check
      _
    $region11: #{tpu_custom_call.1} parent=1 // pred_check_branch
      %47 = sbr.rel (0) target = $region13
    $region12: #{tpu_custom_call.1} parent=1 // pred_region
      %48 = dma.done [#allocation3], 256
    $region13: #{tpu_custom_call.1} parent=1 // pred_fallthru
      _
    // Predicated region
    $region14: #{tpu_custom_call.1} parent=1 // pred_check
      _
    $region15: #{tpu_custom_call.1} parent=1 // pred_check_branch
      %50 = sbr.rel (0) target = $region17
    $region16: #{tpu_custom_call.1} parent=1 // pred_region
      %51 = dma.done [#allocation6], 256
    $region17: #{tpu_custom_call.1} parent=1 // pred_fallthru
      _
    %s52 = sadd.s32 0, 0
    %p53 = scmp.lt.s32.totalorder %s52, 0
    %s54 = scalar_select %p53, %s52, 0
    %s55 = smul.u32 2, %s54
    %s56 = sadd.s32 0, 0
    %p57 = scmp.lt.s32.totalorder %s56, 0
    %s58 = scalar_select %p57, %s56, 0
    %s59 = smul.u32 2, %s58
    %p60 = scmp.eq.s32.totalorder 0, 0
    // Predicated region
    $region18: #{tpu_custom_call.1} parent=1 // pred_check
      %p61 = pneg %p60
    $region19: #{tpu_custom_call.1} parent=1 // pred_check_branch
      %63 = sbr.rel (%p61) target = $region21
    $region20: #{tpu_custom_call.1} parent=1 // pred_region
      %64 = vst [vmem:[#allocation7] sm:$0xff] 0.0
      %65 = vst [vmem:[#allocation7 + $0x8] sm:$0xff] 0.0
      %66 = vst [vmem:[#allocation7 + $0x10] sm:$0xff] 0.0
    $region21: #{tpu_custom_call.1} parent=1 // pred_fallthru
      _
    %s67 = sadd.s32 0, 0
    %s68 = smul.u32 %s67, 16
    %s69 = sadd.s32 %s67, 1
    %s70 = smul.u32 %s69, 16
    %p71 = scmp.le.s32.totalorder %s70, 16
    // Predicated region
    $region22: #{tpu_custom_call.1} parent=1 // pred_check
      %p72 = pneg %p71
    $region23: #{tpu_custom_call.1} parent=1 // pred_check_branch
      %74 = sbr.rel (%p72) target = $region25
    $region24: #{tpu_custom_call.1} parent=1 // pred_region
      %v75 = vld [vmem:[#allocation2] sm:$0xff]
      %v76 = vld [vmem:[#allocation2 + $0x8] sm:$0xff]
      %v77 = vld [vmem:[#allocation5] sm:$0xff]
      %v78 = vld [vmem:[#allocation5 + $0x8] sm:$0xff]
      %v79 = vld [vmem:[#allocation7] sm:$0xff]
      %v80 = vmul.f32 %v75, %v77
      %v81 = vmul.f32 %v76, %v78
      %v82 = vadd.f32 %v80, %v81
      %v83 = vadd.f32 %v79, %v82
      %84 = vst [vmem:[#allocation7] sm:$0xff] %v83
      %s85 = scalar_lea.vmem [#allocation7], 8
      %v86 = vld [vmem:[%s85] sm:$0xff]
      %v87 = vmul.f32 %v75, %v75
      %v88 = vmul.f32 %v76, %v76
      %v89 = vadd.f32 %v87, %v88
      %v90 = vadd.f32 %v86, %v89
      %91 = vst [vmem:[%s85] sm:$0xff] %v90
      %s92 = scalar_lea.vmem [#allocation7], 16
      %v93 = vld [vmem:[%s92] sm:$0xff]
      %v94 = vmul.f32 %v77, %v77
      %v95 = vmul.f32 %v78, %v78
      %v96 = vadd.f32 %v94, %v95
      %v97 = vadd.f32 %v93, %v96
      %98 = vst [vmem:[%s92] sm:$0xff] %v97
    $region25: #{tpu_custom_call.1} parent=1 // pred_fallthru
      _
    %p99 = scmp.gt.s32.totalorder %s70, 16
    // Predicated region
    $region26: #{tpu_custom_call.1} parent=1 // pred_check
      %p100 = pneg %p99
    $region27: #{tpu_custom_call.1} parent=1 // pred_check_branch
      %102 = sbr.rel (%p100) target = $region29
    $region28: #{tpu_custom_call.1} parent=1 // pred_region
      %v103 = vld [vmem:[#allocation2] sm:$0xff]
      %v104 = vld [vmem:[#allocation2 + $0x8] sm:$0xff]
      %v105 = vld [vmem:[#allocation5] sm:$0xff]
      %v106 = vld [vmem:[#allocation5 + $0x8] sm:$0xff]
      %s107 = sadd.s32 %s68, 0
      %v108 = vlaneseq
      %v109 = vshrl.u32 %v108, 7
      %v110 = vadd.s32 %v109, 8
      %v111 = vstv %s107
      %v112 = vadd.s32 %v111, %v109
      %v113 = vadd.s32 %v111, %v110
      %vm114 = vcmp.lt.s32.totalorder %v112, 16
      %vm115 = vcmp.lt.s32.totalorder %v113, 16
      %v116 = vsel %vm114, %v103, 0.0
      %v117 = vsel %vm115, %v104, 0.0
      %v118 = vsel %vm114, %v105, 0.0
      %v119 = vsel %vm115, %v106, 0.0
      %v120 = vld [vmem:[#allocation7] sm:$0xff]
      %v121 = vmul.f32 %v116, %v118
      %v122 = vmul.f32 %v117, %v119
      %v123 = vadd.f32 %v121, %v122
      %v124 = vadd.f32 %v120, %v123
      %125 = vst [vmem:[#allocation7] sm:$0xff] %v124
      %s126 = scalar_lea.vmem [#allocation7], 8
      %v127 = vld [vmem:[%s126] sm:$0xff]
      %v128 = vmul.f32 %v116, %v116
      %v129 = vmul.f32 %v117, %v117
      %v130 = vadd.f32 %v128, %v129
      %v131 = vadd.f32 %v127, %v130
      %132 = vst [vmem:[%s126] sm:$0xff] %v131
      %s133 = scalar_lea.vmem [#allocation7], 16
      %v134 = vld [vmem:[%s133] sm:$0xff]
      %v135 = vmul.f32 %v118, %v118
      %v136 = vmul.f32 %v119, %v119
      %v137 = vadd.f32 %v135, %v136
      %v138 = vadd.f32 %v134, %v137
      %139 = vst [vmem:[%s133] sm:$0xff] %v138
    $region29: #{tpu_custom_call.1} parent=1 // pred_fallthru
      _
    // Predicated region
    $region30: #{tpu_custom_call.1} parent=1 // pred_check
      _
    $region31: #{tpu_custom_call.1} parent=1 // pred_check_branch
      %141 = sbr.rel (0) target = $region33
    $region32: #{tpu_custom_call.1} parent=1 // pred_region
      %s143 = ssub.s32 384, 384
      %144 = vsyncadd [#allocation4], %s143
      %s145 = sshll.u32 [#allocation7], 4
      %s146 = int_to_ptr.vmem [resolvable:$true] %s145
      %151 = dma.vmem_to_hbm [thread:$0]  %s146, 384, %s2, [#allocation4], 128, 128, 8
    $region33: #{tpu_custom_call.1} parent=1 // pred_fallthru
      _
    // Predicated region
    $region34: #{tpu_custom_call.1} parent=1 // pred_check
      _
    $region35: #{tpu_custom_call.1} parent=1 // pred_check_branch
      %153 = sbr.rel (0) target = $region37
    $region36: #{tpu_custom_call.1} parent=1 // pred_region
      %154 = dma.done [#allocation4], 384
    $region37: #{tpu_custom_call.1} parent=1 // pred_fallthru
      _
    %155 = vsyncpa [#allocation3], 1
    %156 = vsyncpa [#allocation6], 1
    %157 = vsyncpa [#allocation4], 1

</llo_original>
